<compile_context>
chip_gen: v5e
topology: v5e:2x2
jax: 0.10.0
libtpu: 0.0.40
codegen_flags: <defaults>
</compile_context>

<pallas_src>
import functools

import jax
import jax.numpy as jnp
import numpy as np
from jax.experimental import pallas as pl
from jax.experimental.pallas import tpu as pltpu

PAD_INDEX = 0
LANE = 128
SUBLANE = 8


def _round_up(x, m):
    return (x + m - 1) // m * m


def _cdiv(a, b):
    return -(-a // b)


def _pool_project_kernel(h_ref, pw_ref, w_ref, out_ref, *, n_pieces, d):
    """Masked mean pooling over sub-token pieces + bias-free projection.

    h_ref:   (rows, k_pad)       bf16  pre-mixed hidden states, piece f in
                                       columns [f*d, (f+1)*d).
    pw_ref:  (rows, n_pieces)    f32   mask/lens pooling weight per piece.
    w_ref:   (d, n_out_pad)      bf16  projection weight (grid-resident).
    out_ref: (rows, n_out_pad)   f32   lane-dense output tile.
    """
    rows = h_ref.shape[0]
    pw = pw_ref[...]                                    # (rows, F) f32
    pooled = jnp.zeros((rows, d), jnp.float32)
    for f in range(n_pieces):                           # static unroll; F (fix_len) is small
        h_f = h_ref[:, f * d:(f + 1) * d].astype(jnp.float32)
        pooled = pooled + h_f * pw[:, f:f + 1]
    out_ref[...] = jnp.dot(
        pooled.astype(jnp.bfloat16), w_ref[...],
        preferred_element_type=jnp.float32,
    ).astype(out_ref.dtype)


def _choose_row_tile(rows, k_pad, n_pieces, n_out_pad, d):
    """Pick a row tile that saturates HBM but fits every generation's VMEM."""
    # per-row bytes held per pipeline buffer: bf16 hidden + f32 pool_w + f32 out
    bytes_per_row = k_pad * 2 + n_pieces * 4 + n_out_pad * 4
    weight_bytes = d * n_out_pad * 2                    # bf16 resident weight
    # sized against v5e's 16 MiB scoped-VMEM default (2x buffers for each block)
    budget = 12 * 1024 * 1024
    max_rows = max(SUBLANE, (budget - 2 * weight_bytes) // (2 * bytes_per_row))
    row_tile = int(min(2048, max_rows))
    # keep >= 2 grid steps for big problems so v7x megacore shards the row axis
    if rows >= 1024:
        row_tile = min(row_tile, _cdiv(rows, 2))
    row_tile = max(SUBLANE, row_tile // SUBLANE * SUBLANE)
    # don't over-pad tiny problems
    row_tile = min(row_tile, _round_up(rows, SUBLANE))
    # even out the tiles so the last grid step isn't mostly padding
    steps = _cdiv(rows, row_tile)
    row_tile = _round_up(_cdiv(rows, steps), SUBLANE)
    return row_tile


def transformer_embedding_forward(tokens, emb_tables, mix_weights, gamma, proj_w):
    """tokens: (B, S, F) int32; returns (B, S, n_out) float32."""
    L, V, D = emb_tables.shape
    B, S, F = tokens.shape
    n_out = proj_w.shape[0]

    k = F * D
    k_pad = _round_up(k, LANE)
    n_out_pad = _round_up(n_out, LANE)

    # ---- glue (plain JAX, all tiny) -------------------------------------
    coeff = gamma * jax.nn.softmax(mix_weights)                      # (L,)
    # TODO(synk): mix_dropout (ScalarMix weight dropout) is an eval-mode no-op.

    # TODO(synk): stand-in for the pretrained transformer backbone (AutoModel
    # hidden states).  Because the stand-in is a linear embedding lookup,
    # ScalarMix commutes with the gather, so the L tables are pre-mixed once
    # here; with a real backbone, L would become a reduction grid axis with an
    # f32 accumulator scratch inside the kernel.
    mixed_table = jnp.einsum("l,lvd->vd", coeff, emb_tables)         # (V, D) f32
    mixed_table = mixed_table.astype(jnp.bfloat16)                   # bf16 stream

    # TODO(synk): when V*D*2 bytes fits VMEM this gather could be fused into
    # the kernel (table resident, stream token ids only), removing the HBM
    # round trip of the materialized hidden states.
    hidden = mixed_table[tokens]                       # (B, S, F, D) bf16
    hidden = hidden.reshape(B * S, k)                  # packed rows, no per-piece pad
    if k_pad != k:
        hidden = jnp.pad(hidden, ((0, 0), (0, k_pad - k)))

    # masked_scatter + lens==0 clamp + mean divide folded into one weight
    mask = (tokens != PAD_INDEX).astype(jnp.float32)                 # (B, S, F)
    lens = jnp.maximum(mask.sum(-1, keepdims=True), 1.0)             # clamp 0 -> 1
    pool_w = (mask / lens).reshape(B * S, F)                         # (R, F) f32

    # bias-free Linear(D, n_out): transpose + zero-pad to 128 output lanes, bf16
    w_pad = jnp.pad(proj_w.T, ((0, 0), (0, n_out_pad - n_out)))      # (D, Np)
    w_pad = w_pad.astype(jnp.bfloat16)

    # TODO(synk): the ragged piece re-packing + stride-window loop of the
    # original forward is a no-op when the packed sequence fits in max_len.

    # ---- row tiling ------------------------------------------------------
    rows = B * S
    row_tile = _choose_row_tile(rows, k_pad, F, n_out_pad, D)
    rows_pad = _round_up(rows, row_tile)
    if rows_pad != rows:
        hidden = jnp.pad(hidden, ((0, rows_pad - rows), (0, 0)))
        pool_w = jnp.pad(pool_w, ((0, rows_pad - rows), (0, 0)))

    kernel = functools.partial(_pool_project_kernel, n_pieces=F, d=D)

    out = pl.pallas_call(
        kernel,
        out_shape=jax.ShapeDtypeStruct((rows_pad, n_out_pad), jnp.float32),
        grid=(rows_pad // row_tile,),
        in_specs=[
            pl.BlockSpec((row_tile, k_pad), lambda r: (r, 0)),
            pl.BlockSpec((row_tile, F), lambda r: (r, 0)),
            pl.BlockSpec((D, n_out_pad), lambda r: (0, 0)),  # resident weight
        ],
        out_specs=pl.BlockSpec((row_tile, n_out_pad), lambda r: (r, 0)),
        compiler_params=pltpu.CompilerParams(
            dimension_semantics=("parallel",),
            # blocks are sized (<= ~12 MiB working set) to fit v5e's 16 MiB
            # scoped default; the explicit limit documents headroom and stays
            # well under v7x's 64 MiB physical VMEM.
            vmem_limit_bytes=32 * 1024 * 1024,
        ),
    )(hidden, pool_w, w_pad)

    # TODO(synk): output kept f32 (module semantics); emit bf16 here if the
    # downstream consumer accepts it to halve output HBM bytes.
    return out[:rows, :n_out].reshape(B, S, n_out)


def reference_forward(tokens, emb_tables, mix_weights, gamma, proj_w):
    """Pure-JAX f32 reference with the module's semantics (mean pooling path)."""
    mask = (tokens != PAD_INDEX).astype(jnp.float32)
    lens = mask.sum(-1)
    lens = jnp.where(lens == 0.0, 1.0, lens)
    coeff = gamma * jax.nn.softmax(mix_weights)
    hidden = emb_tables[:, tokens]                            # (L, B, S, F, D)
    mixed = jnp.einsum("l,lbsfd->bsfd", coeff, hidden)
    mixed = mixed * mask[..., None]
    pooled = mixed.sum(2) / lens[..., None]
    return pooled @ proj_w.T


if __name__ == "__main__":
    # Small shapes consistent with the module's forward:
    # tokens [batch=2, seq_len=8, fix_len=4], hidden_size=32, n_out=16,
    # n_layers=4 mixed hidden states.
    B, S, F = 2, 8, 4
    D, N_OUT, L, VOCAB = 32, 16, 4, 32

    key = jax.random.PRNGKey(0)
    k_tok, k_emb, k_mix, k_proj = jax.random.split(key, 4)

    # token ids; id 0 is the pad index, randint naturally produces some pads
    tokens = jax.random.randint(k_tok, (B, S, F), 0, VOCAB, dtype=jnp.int32)
    # force a fully-padded word to exercise the lens==0 -> 1 clamp
    tokens = tokens.at[1, S - 1, :].set(PAD_INDEX)

    emb_tables = jax.random.normal(k_emb, (L, VOCAB, D), jnp.float32) * 0.1
    mix_weights = jax.random.normal(k_mix, (L,), jnp.float32)          # ScalarMix.weights
    gamma = jnp.float32(1.0)                                           # ScalarMix.gamma
    proj_w = jax.random.normal(k_proj, (N_OUT, D), jnp.float32) * 0.1  # Linear(D, n_out, bias=False)

    out = transformer_embedding_forward(tokens, emb_tables, mix_weights, gamma, proj_w)
    out = jax.block_until_ready(out)

    ref = reference_forward(tokens, emb_tables, mix_weights, gamma, proj_w)
    # tolerance reflects the bf16 hidden stream + bf16 projection matmul
    np.testing.assert_allclose(np.asarray(out), np.asarray(ref), rtol=5e-2, atol=5e-3)

    assert out.shape == (B, S, N_OUT) and out.dtype == jnp.float32
    print("KERNEL_OK")
</pallas_src>

<mosaic_0001>
module attributes {stable_mosaic.version = 11 : i64} {
  func.func @_pool_project_kernel(%arg0: i32, %arg1: memref<16x128xbf16, #tpu.memory_space<vmem>>, %arg2: memref<16x4xf32, #tpu.memory_space<vmem>>, %arg3: memref<32x128xbf16, #tpu.memory_space<vmem>>, %arg4: memref<16x128xf32, #tpu.memory_space<vmem>>) attributes {dimension_semantics = [#tpu.dimension_semantics<parallel>], iteration_bounds = array<i64: 1>, scalar_prefetch = 0 : i64, scratch_operands = 0 : i64, tpu.core_type = #tpu.core_type<tc>, window_params = [{transform_indices = @transform_0, window_bounds = array<i64: 16, 128>}, {transform_indices = @transform_1, window_bounds = array<i64: 16, 4>}, {pipeline_mode = #tpu.pipeline_mode<synchronous>, transform_indices = @transform_2, window_bounds = array<i64: 32, 128>}, {transform_indices = @transform_3, window_bounds = array<i64: 16, 128>}]} {
    %c0 = arith.constant 0 : index
    %c0_0 = arith.constant 0 : index
    %0 = vector.load %arg2[%c0, %c0_0] : memref<16x4xf32, #tpu.memory_space<vmem>>, vector<16x4xf32>
    %cst = arith.constant 0.000000e+00 : f32
    %1 = vector.broadcast %cst : f32 to vector<16x32xf32>
    %c0_1 = arith.constant 0 : index
    %c0_2 = arith.constant 0 : index
    %2 = vector.load %arg1[%c0_1, %c0_2] : memref<16x128xbf16, #tpu.memory_space<vmem>>, vector<16x32xbf16>
    %3 = arith.extf %2 : vector<16x32xbf16> to vector<16x32xf32>
    %4 = vector.extract_strided_slice %0 {offsets = [0, 0], sizes = [16, 1], strides = [1, 1]} : vector<16x4xf32> to vector<16x1xf32>
    %5 = vector.broadcast %4 : vector<16x1xf32> to vector<16x32xf32>
    %6 = arith.mulf %3, %5 : vector<16x32xf32>
    %7 = arith.addf %1, %6 : vector<16x32xf32>
    %c0_3 = arith.constant 0 : index
    %c32 = arith.constant 32 : index
    %8 = vector.load %arg1[%c0_3, %c32] : memref<16x128xbf16, #tpu.memory_space<vmem>>, vector<16x32xbf16>
    %9 = arith.extf %8 : vector<16x32xbf16> to vector<16x32xf32>
    %10 = vector.extract_strided_slice %0 {offsets = [0, 1], sizes = [16, 1], strides = [1, 1]} : vector<16x4xf32> to vector<16x1xf32>
    %11 = vector.broadcast %10 : vector<16x1xf32> to vector<16x32xf32>
    %12 = arith.mulf %9, %11 : vector<16x32xf32>
    %13 = arith.addf %7, %12 : vector<16x32xf32>
    %c0_4 = arith.constant 0 : index
    %c64 = arith.constant 64 : index
    %14 = vector.load %arg1[%c0_4, %c64] : memref<16x128xbf16, #tpu.memory_space<vmem>>, vector<16x32xbf16>
    %15 = arith.extf %14 : vector<16x32xbf16> to vector<16x32xf32>
    %16 = vector.extract_strided_slice %0 {offsets = [0, 2], sizes = [16, 1], strides = [1, 1]} : vector<16x4xf32> to vector<16x1xf32>
    %17 = vector.broadcast %16 : vector<16x1xf32> to vector<16x32xf32>
    %18 = arith.mulf %15, %17 : vector<16x32xf32>
    %19 = arith.addf %13, %18 : vector<16x32xf32>
    %c0_5 = arith.constant 0 : index
    %c96 = arith.constant 96 : index
    %20 = vector.load %arg1[%c0_5, %c96] : memref<16x128xbf16, #tpu.memory_space<vmem>>, vector<16x32xbf16>
    %21 = arith.extf %20 : vector<16x32xbf16> to vector<16x32xf32>
    %22 = vector.extract_strided_slice %0 {offsets = [0, 3], sizes = [16, 1], strides = [1, 1]} : vector<16x4xf32> to vector<16x1xf32>
    %23 = vector.broadcast %22 : vector<16x1xf32> to vector<16x32xf32>
    %24 = arith.mulf %21, %23 : vector<16x32xf32>
    %25 = arith.addf %19, %24 : vector<16x32xf32>
    %26 = arith.truncf %25 : vector<16x32xf32> to vector<16x32xbf16>
    %c0_6 = arith.constant 0 : index
    %c0_7 = arith.constant 0 : index
    %27 = vector.load %arg3[%c0_6, %c0_7] : memref<32x128xbf16, #tpu.memory_space<vmem>>, vector<32x128xbf16>
    %cst_8 = arith.constant dense<0.000000e+00> : vector<16x128xf32>
    %28 = tpu.matmul %26, %27, %cst_8 {dimension_numbers = #tpu.dot_dimension_numbers<[1], [0], [0], [1], [0, 0, 1, 1], [], []>} : vector<16x32xbf16>, vector<32x128xbf16>, vector<16x128xf32> -> vector<16x128xf32>
    %c0_9 = arith.constant 0 : index
    %c0_10 = arith.constant 0 : index
    %29 = vector.load %arg4[%c0_9, %c0_10] : memref<16x128xf32, #tpu.memory_space<vmem>>, vector<16x128xf32>
    tpu.vector_store %arg4[%c0_9, %c0_10], %28 {strides = array<i32>} : memref<16x128xf32, #tpu.memory_space<vmem>>, vector<16x128xf32>,
    return
  }
  func.func @transform_0(%arg0: i32) -> (i32, i32) {
    %c0_i32 = arith.constant 0 : i32
    %c0_i32_0 = arith.constant 0 : i32
    return %arg0, %c0_i32 : i32, i32
  }
  func.func @transform_1(%arg0: i32) -> (i32, i32) {
    %c0_i32 = arith.constant 0 : i32
    %c0_i32_0 = arith.constant 0 : i32
    return %arg0, %c0_i32 : i32, i32
  }
  func.func @transform_2(%arg0: i32) -> (i32, i32) {
    %c0_i32 = arith.constant 0 : i32
    %c0_i32_0 = arith.constant 0 : i32
    %c0_i32_1 = arith.constant 0 : i32
    return %c0_i32, %c0_i32_0 : i32, i32
  }
  func.func @transform_3(%arg0: i32) -> (i32, i32) {
    %c0_i32 = arith.constant 0 : i32
    %c0_i32_0 = arith.constant 0 : i32
    return %arg0, %c0_i32 : i32, i32
  }
}

</mosaic_0001>

<llo_original>
// kernel: tpu_custom_call.1
$region0: #{tpu_custom_call.1}
  #allocation0 [shape = 'u32[]', space=smem, size = 0x4, offset = 0x4, fixed_abs, tag = 'smem constant byte address 0x4 - core index']
  #allocation1 [shape = 'u32[72,128]{1,0:T(1,128)}', space=vmem, size = 0x9000, scoped, tag = 'internal scratch']
  %s0 = inlined_call_operand.hbm [shape: bf16[16,128], index: 0, kind: input, shape index: {}]
  %s1 = inlined_call_operand.vmem [shape: f32[16,4], index: 1, kind: input, shape index: {}]
  %s2 = inlined_call_operand.vmem [shape: bf16[32,128], index: 2, kind: input, shape index: {}]
  %s3 = inlined_call_operand.hbm [shape: f32[16,128], index: 3, kind: output, shape index: {}]
  %s4 = sld [smem:[#allocation0]]
  $region26: #{tpu_custom_call.1} parent=0
    _
  %s6 = ssub.s32 1, %s4
  %s7 = scalar_select 0, %s6, %s4
  $region1: #{tpu_custom_call.1} parent=0
    #allocation2 [shape = 'u8[4096]{0}', space=vmem, size = 0x1000, scoped, tag = 'input window, operand 0, single buffered']
    #allocation3 [shape = 's32[1]{0}', space=sflag, size = 0x4, scoped, tag = 'scoped memory for tpu_custom_call.1']
    #allocation4 [shape = 's32[1]{0}', space=sflag, size = 0x4, scoped, tag = 'scoped memory for tpu_custom_call.1']
    #allocation5 [shape = 'u8[8192]{0}', space=vmem, size = 0x2000, scoped, tag = 'output window, operand 0, single buffered']
    %8 = vsyncpa [#allocation3], 0
    %9 = vsyncpa [#allocation4], 0
    // Predicated region
    $region2: #{tpu_custom_call.1} parent=1 // pred_check
      _
    $region3: #{tpu_custom_call.1} parent=1 // pred_check_branch
      %11 = sbr.rel (0) target = $region5
    $region4: #{tpu_custom_call.1} parent=1 // pred_region
      %13 = vsyncadd [#allocation3], 0
      %s14 = sshll.u32 %s0, 4
      %s15 = int_to_ptr.hbm [resolvable:$true] %s14
      %s16 = sshll.u32 [#allocation2], 4
      %s17 = int_to_ptr.vmem [resolvable:$true] %s16
      %22 = dma.hbm_to_vmem [thread:$0]  %s15, 128, %s17, [#allocation3], 64, 64, 4
    $region5: #{tpu_custom_call.1} parent=1 // pred_fallthru
      _
    // Predicated region
    $region6: #{tpu_custom_call.1} parent=1 // pred_check
      _
    $region7: #{tpu_custom_call.1} parent=1 // pred_check_branch
      %24 = sbr.rel (0) target = $region9
    $region8: #{tpu_custom_call.1} parent=1 // pred_region
      _
    $region9: #{tpu_custom_call.1} parent=1 // pred_fallthru
      _
    // Predicated region
    $region10: #{tpu_custom_call.1} parent=1 // pred_check
      _
    $region11: #{tpu_custom_call.1} parent=1 // pred_check_branch
      %26 = sbr.rel (0) target = $region13
    $region12: #{tpu_custom_call.1} parent=1 // pred_region
      _
    $region13: #{tpu_custom_call.1} parent=1 // pred_fallthru
      _
    // Predicated region
    $region14: #{tpu_custom_call.1} parent=1 // pred_check
      _
    $region15: #{tpu_custom_call.1} parent=1 // pred_check_branch
      %28 = sbr.rel (0) target = $region17
    $region16: #{tpu_custom_call.1} parent=1 // pred_region
      %30 = dma.done [#allocation3], 128
    $region17: #{tpu_custom_call.1} parent=1 // pred_fallthru
      _
    %v32 = vld [vmem:[%s1] sm:$0xff]
    %v33 = vld [vmem:[%s1 + $0x8] sm:$0xff]
    %v34 = vld [vmem:[#allocation2] sm:$0xf]
    %v35 = vld [vmem:[#allocation2 + $0x4] sm:$0xf]
    %v36 = vunpack.c.l.bf16 %v34
    %v37 = vunpack.c.l.bf16 %v35
    %39 = vset.pattern.permute.xlu0 0
    %40 = vperm.xlu0 %39, %v32
    %v41 = vpop.permute.xlu0 %40
    %44 = vset.pattern.permute.xlu0 0
    %45 = vperm.xlu0 %44, %v33
    %v46 = vpop.permute.xlu0 %45
    %v48 = vmul.f32 %v36, %v41
    %v49 = vmul.f32 %v37, %v46
    %v50 = vadd.f32 %v48, 0.0
    %v51 = vadd.f32 %v49, 0.0
    %52 = vset.pattern.permute.xlu0 1
    %53 = vperm.xlu0 %52, %v32
    %v54 = vpop.permute.xlu0 %53
    %56 = vset.pattern.permute.xlu0 1
    %57 = vperm.xlu0 %56, %v33
    %v58 = vpop.permute.xlu0 %57
    %v60 = vmul.f32 %v36, %v54
    %v61 = vmul.f32 %v37, %v58
    %64 = vrot.lane.b32.xlu0 %v60, 96
    %v65 = vpop.permute.xlu0 %64
    %66 = vrot.lane.b32.xlu0 %v61, 96
    %v67 = vpop.permute.xlu0 %66
    %v70 = vadd.f32 %v50, %v65
    %v71 = vadd.f32 %v51, %v67
    %72 = vset.pattern.permute.xlu0 2
    %73 = vperm.xlu0 %72, %v32
    %v74 = vpop.permute.xlu0 %73
    %76 = vset.pattern.permute.xlu0 2
    %77 = vperm.xlu0 %76, %v33
    %v78 = vpop.permute.xlu0 %77
    %v80 = vmul.f32 %v36, %v74
    %v81 = vmul.f32 %v37, %v78
    %84 = vrot.lane.b32.xlu0 %v80, 64
    %v85 = vpop.permute.xlu0 %84
    %86 = vrot.lane.b32.xlu0 %v81, 64
    %v87 = vpop.permute.xlu0 %86
    %v90 = vadd.f32 %v70, %v85
    %v91 = vadd.f32 %v71, %v87
    %92 = vset.pattern.permute.xlu0 3
    %93 = vperm.xlu0 %92, %v32
    %v94 = vpop.permute.xlu0 %93
    %96 = vset.pattern.permute.xlu0 3
    %97 = vperm.xlu0 %96, %v33
    %v98 = vpop.permute.xlu0 %97
    %v100 = vmul.f32 %v36, %v94
    %v101 = vmul.f32 %v37, %v98
    %104 = vrot.lane.b32.xlu0 %v100, 32
    %v105 = vpop.permute.xlu0 %104
    %106 = vrot.lane.b32.xlu0 %v101, 32
    %v107 = vpop.permute.xlu0 %106
    %v110 = vadd.f32 %v90, %v105
    %v111 = vadd.f32 %v91, %v107
    %v112 = vpack.c.bf16 %v111, %v110
    %v113 = vld [vmem:[%s2] sm:$0xf]
    %v114 = vld [vmem:[%s2 + $0x4] sm:$0xf]
    %v115 = vld [vmem:[%s2 + $0x8] sm:$0xf]
    %v116 = vld [vmem:[%s2 + $0xc] sm:$0xf]
    %v121 = vunpack.c.l.b16 %v113
    %v122 = vunpack.c.l.b16 %v114
    %v123 = vunpack.c.l.b16 %v115
    %v124 = vunpack.c.l.b16 %v116
    %v125 = vpack.c.b16 %v122, %v121
    %v126 = vpack.c.b16 %v124, %v123
    %vm129 = vcmask 261120
    %v131 = vsel %vm129, %v112, 0
    %133 = vmatpush.bf16.msra.mxu0 0
    %134 = vmatpush.bf16.msra.mxu0 0
    %135 = vmatpush.bf16.msra.mxu0 0
    %136 = vmatpush.bf16.msra.mxu0 0
    %137 = vmatpush.bf16.msra.mxu0 0
    %138 = vmatpush.bf16.msra.mxu0 0
    %139 = vmatpush.bf16.msra.mxu0 %v126
    %140 = vmatpush.bf16.msra.mxu0 %v125
    %141 = vmatmul.bf16.gmra.mxu0 %v131
    %v142 = vpop.f32.mrf.mxu0
    %v143 = vadd.f32 0.0, %v142
    %v144 = vpop.f32.mrf.mxu0
    %v145 = vadd.f32 0.0, %v144
    %146 = vdwg.mxu0
    %147 = vst [vmem:[#allocation5] sm:$0xff] %v143
    %148 = vst [vmem:[#allocation5 + $0x8] sm:$0xff] %v145
    // Predicated region
    $region18: #{tpu_custom_call.1} parent=1 // pred_check
      _
    $region19: #{tpu_custom_call.1} parent=1 // pred_check_branch
      %150 = sbr.rel (0) target = $region21
    $region20: #{tpu_custom_call.1} parent=1 // pred_region
      %152 = vsyncadd [#allocation4], 0
      %s153 = sshll.u32 [#allocation5], 4
      %s154 = int_to_ptr.vmem [resolvable:$true] %s153
      %s155 = sshll.u32 %s3, 4
      %s156 = int_to_ptr.hbm [resolvable:$true] %s155
      %161 = dma.vmem_to_hbm [thread:$0]  %s154, 256, %s156, [#allocation4], 128, 128, 8
    $region21: #{tpu_custom_call.1} parent=1 // pred_fallthru
      _
    // Predicated region
    $region22: #{tpu_custom_call.1} parent=1 // pred_check
      _
    $region23: #{tpu_custom_call.1} parent=1 // pred_check_branch
      %163 = sbr.rel (0) target = $region25
    $region24: #{tpu_custom_call.1} parent=1 // pred_region
      %165 = dma.done [#allocation4], 256
    $region25: #{tpu_custom_call.1} parent=1 // pred_fallthru
      _
    %166 = vsyncpa [#allocation3], 1
    %167 = vsyncpa [#allocation4], 1

</llo_original>
